<compile_context>
chip_gen: v7x
topology: tpu7x:2x2x1
jax: 0.10.0
libtpu: 0.0.40
codegen_flags: <defaults>
</compile_context>

<pallas_src>
import math
import jax
import jax.numpy as jnp
from jax import lax
from jax.experimental import pallas as pl
from jax.experimental.pallas import tpu as pltpu


def _round_up(x, m):
    return ((x + m - 1) // m) * m


def my_rnn_forward(x_tokens, params, init_state=None):
    """x_tokens: (B, T) int32 token ids.  Returns (B, n_class) f32 logits."""
    C_emb, U, V, W, b = params["C"], params["U"], params["V"], params["W"], params["b"]
    B, T = x_tokens.shape
    H = U.shape[1]
    n_class = W.shape[0]

    # ---- TPU-friendly padded sizes: 8 sublanes for batch, 128 lanes for H ----
    Bp = max(_round_up(B, 8), 8)
    Hp = max(_round_up(H, 128), 128)

    # ---- plain-JAX prologue: fold the input projection into the embedding ----
    # (x_t @ U has no serial dependency, so it is hoisted out of the kernel.)
    CU = jnp.dot(C_emb.astype(jnp.float32), U.astype(jnp.float32),
                 preferred_element_type=jnp.float32)          # (n_class, H)
    CU_p = jnp.zeros((CU.shape[0], Hp), jnp.float32).at[:, :H].set(CU)

    # Gather straight into the padded, time-major layout (batch padded with
    # dummy token 0 -- those rows evolve independently and are discarded).
    tok_p = jnp.zeros((Bp, T), x_tokens.dtype).at[:B, :].set(x_tokens)
    ig_p = jnp.take(CU_p, tok_p.T, axis=0)                    # (T, Bp, Hp)

    V_p = jnp.zeros((Hp, Hp), jnp.float32).at[:H, :H].set(V.astype(jnp.float32))

    # Absorb a non-zero initial state exactly: step 0 in-kernel computes
    # tanh(ig_0 + 0 @ V); pre-adding h0 @ V into ig_0 makes that identical to
    # tanh(ig_0 + h0 @ V) (adding an exact 0.0 is exact).
    if init_state is not None:
        h0_p = jnp.zeros((Bp, Hp), jnp.float32).at[:B, :H].set(
            init_state.astype(jnp.float32))
        ig_p = ig_p.at[0].add(
            jnp.dot(h0_p, V_p, preferred_element_type=jnp.float32))

    # ---- T-chunking: big enough to amortize grid overhead, VMEM-safe ----
    step_bytes = Bp * Hp * 4
    TC = max(1, min(T, 256, (4 * 1024 * 1024) // step_bytes))
    nchunks = pl.cdiv(T, TC)
    Tp = nchunks * TC
    need_mask = (Tp != T)
    if need_mask:
        ig_p = jnp.concatenate(
            [ig_p, jnp.zeros((Tp - T, Bp, Hp), jnp.float32)], axis=0)

    def rnn_chunk_kernel(ig_ref, v_ref, h_ref):
        """One T-chunk per grid step.

        ig_ref : (TC, Bp, Hp)  precomputed input projections for this chunk
        v_ref  : (Hp, Hp)      hidden->hidden weights (grid-invariant)
        h_ref  : (Bp, Hp)      hidden state; resident output block = the carry
        """
        c = pl.program_id(0)

        @pl.when(c == 0)
        def _():
            h_ref[...] = jnp.zeros_like(h_ref)

        v = v_ref[...]
        h_in = h_ref[...]

        def body(i, h):
            # Single serial MXU matmul per timestep on the critical path.
            h_new = jnp.tanh(
                ig_ref[i]
                + jnp.dot(h, v, preferred_element_type=jnp.float32))
            if need_mask:
                h_new = jnp.where(c * TC + i < T, h_new, h)
            return h_new

        h_out = lax.fori_loop(0, TC, body, h_in, unroll=min(TC, 8))
        h_ref[...] = h_out

    h_final_p = pl.pallas_call(
        rnn_chunk_kernel,
        out_shape=jax.ShapeDtypeStruct((Bp, Hp), jnp.float32),
        grid_spec=pltpu.PrefetchScalarGridSpec(
            num_scalar_prefetch=0,
            grid=(nchunks,),
            in_specs=[
                # streamed per-chunk i_g blocks (double-buffered by the pipeline)
                pl.BlockSpec((TC, Bp, Hp), lambda c: (c, 0, 0)),
                # hidden->hidden weights, resident across the whole grid
                pl.BlockSpec((Hp, Hp), lambda c: (0, 0)),
            ],
            out_specs=pl.BlockSpec((Bp, Hp), lambda c: (0, 0)),
        ),
        compiler_params=pltpu.CompilerParams(
            dimension_semantics=("arbitrary",),   # recurrence is serial over T
            vmem_limit_bytes=32 * 1024 * 1024,    # portable to v7x (64 MiB VMEM)
        ),
    )(ig_p, V_p)

    # ---- plain-JAX epilogue: classifier used exactly once ----
    logits = (jnp.dot(h_final_p[:B, :H], W.T.astype(jnp.float32),
                      preferred_element_type=jnp.float32)
              + b.astype(jnp.float32))
    return logits


def init_params(key, n_class, emb_size, hidden_size):
    """Matches MyRnn.init(): every parameter ~ U(-stdv, stdv), stdv = 1/sqrt(H)."""
    stdv = 1.0 / math.sqrt(hidden_size)
    k_c, k_u, k_v, k_w, k_b = jax.random.split(key, 5)
    uni = lambda k, shape: jax.random.uniform(
        k, shape, dtype=jnp.float32, minval=-stdv, maxval=stdv
    )
    return {
        "C": uni(k_c, (n_class, emb_size)),
        "U": uni(k_u, (emb_size, hidden_size)),
        "V": uni(k_v, (hidden_size, hidden_size)),
        "W": uni(k_w, (n_class, hidden_size)),   # nn.Linear(hidden, n_class).weight
        "b": uni(k_b, (n_class,)),
    }


def reference_forward(x_tokens, params, init_state=None):
    """Pure-JAX reference mirroring the PyTorch forward exactly."""
    C_emb, U, V, W, b = params["C"], params["U"], params["V"], params["W"], params["b"]
    x = jnp.take(C_emb, x_tokens, axis=0)              # (B, T, E)
    B, T, _ = x.shape
    H = U.shape[1]
    h_t = (jnp.zeros((B, H), dtype=jnp.float32)
           if init_state is None else init_state.astype(jnp.float32))
    for i in range(T):
        i_g = x[:, i, :] @ U
        h_g = h_t @ V
        h_t = jnp.tanh(i_g + h_g)
    return h_t @ W.T + b


if __name__ == "__main__":
    n_class, emb_size, hidden_size = 32, 16, 32
    B, T = 2, 8

    key = jax.random.PRNGKey(0)
    k_params, k_tokens = jax.random.split(key)
    params = init_params(k_params, n_class, emb_size, hidden_size)
    x_tokens = jax.random.randint(k_tokens, (B, T), 0, n_class, dtype=jnp.int32)

    out = my_rnn_forward(x_tokens, params)
    out = jax.block_until_ready(out)

    ref = reference_forward(x_tokens, params)
    assert out.shape == (B, n_class)
    assert jnp.allclose(out, ref, atol=1e-5, rtol=1e-5), \
        f"max err {jnp.max(jnp.abs(out - ref))}"

    # Also check the init_state path.
    h0 = jax.random.normal(jax.random.PRNGKey(7), (B, hidden_size), jnp.float32)
    out2 = jax.block_until_ready(my_rnn_forward(x_tokens, params, init_state=h0))
    ref2 = reference_forward(x_tokens, params, init_state=h0)
    assert jnp.allclose(out2, ref2, atol=1e-5, rtol=1e-5), \
        f"max err (init_state) {jnp.max(jnp.abs(out2 - ref2))}"

    print("KERNEL_OK")
</pallas_src>

<mosaic_0001>
module attributes {stable_mosaic.version = 11 : i64} {
  func.func @rnn_chunk_kernel(%arg0: i32, %arg1: memref<8x8x128xf32, #tpu.memory_space<vmem>>, %arg2: memref<128x128xf32, #tpu.memory_space<vmem>>, %arg3: memref<8x128xf32, #tpu.memory_space<vmem>>) attributes {dimension_semantics = [#tpu.dimension_semantics<arbitrary>], iteration_bounds = array<i64: 1>, scalar_prefetch = 0 : i64, scratch_operands = 0 : i64, tpu.core_type = #tpu.core_type<tc>, window_params = [{transform_indices = @transform_0, window_bounds = array<i64: 8, 8, 128>}, {pipeline_mode = #tpu.pipeline_mode<synchronous>, transform_indices = @transform_1, window_bounds = array<i64: 128, 128>}, {pipeline_mode = #tpu.pipeline_mode<synchronous>, transform_indices = @transform_2, window_bounds = array<i64: 8, 128>}]} {
    %c0_i32 = arith.constant 0 : i32
    %0 = arith.cmpi eq, %arg0, %c0_i32 : i32
    %1 = arith.extui %0 : i1 to i32
    %c0_i32_0 = arith.constant 0 : i32
    %2 = arith.cmpi ne, %1, %c0_i32_0 : i32
    scf.if %2 {
      %cst_30 = arith.constant 0.000000e+00 : f32
      %54 = vector.broadcast %cst_30 : f32 to vector<8x128xf32>
      %c0_31 = arith.constant 0 : index
      %c0_32 = arith.constant 0 : index
      %55 = vector.load %arg3[%c0_31, %c0_32] : memref<8x128xf32, #tpu.memory_space<vmem>>, vector<8x128xf32>
      tpu.vector_store %arg3[%c0_31, %c0_32], %54 {strides = array<i32>} : memref<8x128xf32, #tpu.memory_space<vmem>>, vector<8x128xf32>,
    } else {
    }
    %c0 = arith.constant 0 : index
    %c0_1 = arith.constant 0 : index
    %3 = vector.load %arg2[%c0, %c0_1] : memref<128x128xf32, #tpu.memory_space<vmem>>, vector<128x128xf32>
    %c0_2 = arith.constant 0 : index
    %c0_3 = arith.constant 0 : index
    %4 = vector.load %arg3[%c0_2, %c0_3] : memref<8x128xf32, #tpu.memory_space<vmem>>, vector<8x128xf32>
    %c0_i32_4 = arith.constant 0 : i32
    %5 = arith.index_cast %c0_i32_4 : i32 to index
    %c0_5 = arith.constant 0 : index
    %c0_6 = arith.constant 0 : index
    %6 = vector.load %arg1[%5, %c0_5, %c0_6] : memref<8x8x128xf32, #tpu.memory_space<vmem>>, vector<1x8x128xf32>
    %7 = vector.shape_cast %6 : vector<1x8x128xf32> to vector<8x128xf32>
    %cst = arith.constant dense<0.000000e+00> : vector<8x128xf32>
    %8 = tpu.matmul %4, %3, %cst {dimension_numbers = #tpu.dot_dimension_numbers<[1], [0], [0], [1], [0, 0, 1, 1], [], []>} : vector<8x128xf32>, vector<128x128xf32>, vector<8x128xf32> -> vector<8x128xf32>
    %9 = arith.addf %7, %8 : vector<8x128xf32>
    %10 = math.tanh %9 : vector<8x128xf32>
    %c1_i32 = arith.constant 1 : i32
    %11 = arith.index_cast %c1_i32 : i32 to index
    %c0_7 = arith.constant 0 : index
    %c0_8 = arith.constant 0 : index
    %12 = vector.load %arg1[%11, %c0_7, %c0_8] : memref<8x8x128xf32, #tpu.memory_space<vmem>>, vector<1x8x128xf32>
    %13 = vector.shape_cast %12 : vector<1x8x128xf32> to vector<8x128xf32>
    %cst_9 = arith.constant dense<0.000000e+00> : vector<8x128xf32>
    %14 = tpu.matmul %10, %3, %cst_9 {dimension_numbers = #tpu.dot_dimension_numbers<[1], [0], [0], [1], [0, 0, 1, 1], [], []>} : vector<8x128xf32>, vector<128x128xf32>, vector<8x128xf32> -> vector<8x128xf32>
    %15 = arith.addf %13, %14 : vector<8x128xf32>
    %16 = math.tanh %15 : vector<8x128xf32>
    %c2_i32 = arith.constant 2 : i32
    %17 = arith.index_cast %c2_i32 : i32 to index
    %c0_10 = arith.constant 0 : index
    %c0_11 = arith.constant 0 : index
    %18 = vector.load %arg1[%17, %c0_10, %c0_11] : memref<8x8x128xf32, #tpu.memory_space<vmem>>, vector<1x8x128xf32>
    %19 = vector.shape_cast %18 : vector<1x8x128xf32> to vector<8x128xf32>
    %cst_12 = arith.constant dense<0.000000e+00> : vector<8x128xf32>
    %20 = tpu.matmul %16, %3, %cst_12 {dimension_numbers = #tpu.dot_dimension_numbers<[1], [0], [0], [1], [0, 0, 1, 1], [], []>} : vector<8x128xf32>, vector<128x128xf32>, vector<8x128xf32> -> vector<8x128xf32>
    %21 = arith.addf %19, %20 : vector<8x128xf32>
    %22 = math.tanh %21 : vector<8x128xf32>
    %c3_i32 = arith.constant 3 : i32
    %23 = arith.index_cast %c3_i32 : i32 to index
    %c0_13 = arith.constant 0 : index
    %c0_14 = arith.constant 0 : index
    %24 = vector.load %arg1[%23, %c0_13, %c0_14] : memref<8x8x128xf32, #tpu.memory_space<vmem>>, vector<1x8x128xf32>
    %25 = vector.shape_cast %24 : vector<1x8x128xf32> to vector<8x128xf32>
    %cst_15 = arith.constant dense<0.000000e+00> : vector<8x128xf32>
    %26 = tpu.matmul %22, %3, %cst_15 {dimension_numbers = #tpu.dot_dimension_numbers<[1], [0], [0], [1], [0, 0, 1, 1], [], []>} : vector<8x128xf32>, vector<128x128xf32>, vector<8x128xf32> -> vector<8x128xf32>
    %27 = arith.addf %25, %26 : vector<8x128xf32>
    %28 = math.tanh %27 : vector<8x128xf32>
    %c4_i32 = arith.constant 4 : i32
    %29 = arith.index_cast %c4_i32 : i32 to index
    %c0_16 = arith.constant 0 : index
    %c0_17 = arith.constant 0 : index
    %30 = vector.load %arg1[%29, %c0_16, %c0_17] : memref<8x8x128xf32, #tpu.memory_space<vmem>>, vector<1x8x128xf32>
    %31 = vector.shape_cast %30 : vector<1x8x128xf32> to vector<8x128xf32>
    %cst_18 = arith.constant dense<0.000000e+00> : vector<8x128xf32>
    %32 = tpu.matmul %28, %3, %cst_18 {dimension_numbers = #tpu.dot_dimension_numbers<[1], [0], [0], [1], [0, 0, 1, 1], [], []>} : vector<8x128xf32>, vector<128x128xf32>, vector<8x128xf32> -> vector<8x128xf32>
    %33 = arith.addf %31, %32 : vector<8x128xf32>
    %34 = math.tanh %33 : vector<8x128xf32>
    %c5_i32 = arith.constant 5 : i32
    %35 = arith.index_cast %c5_i32 : i32 to index
    %c0_19 = arith.constant 0 : index
    %c0_20 = arith.constant 0 : index
    %36 = vector.load %arg1[%35, %c0_19, %c0_20] : memref<8x8x128xf32, #tpu.memory_space<vmem>>, vector<1x8x128xf32>
    %37 = vector.shape_cast %36 : vector<1x8x128xf32> to vector<8x128xf32>
    %cst_21 = arith.constant dense<0.000000e+00> : vector<8x128xf32>
    %38 = tpu.matmul %34, %3, %cst_21 {dimension_numbers = #tpu.dot_dimension_numbers<[1], [0], [0], [1], [0, 0, 1, 1], [], []>} : vector<8x128xf32>, vector<128x128xf32>, vector<8x128xf32> -> vector<8x128xf32>
    %39 = arith.addf %37, %38 : vector<8x128xf32>
    %40 = math.tanh %39 : vector<8x128xf32>
    %c6_i32 = arith.constant 6 : i32
    %41 = arith.index_cast %c6_i32 : i32 to index
    %c0_22 = arith.constant 0 : index
    %c0_23 = arith.constant 0 : index
    %42 = vector.load %arg1[%41, %c0_22, %c0_23] : memref<8x8x128xf32, #tpu.memory_space<vmem>>, vector<1x8x128xf32>
    %43 = vector.shape_cast %42 : vector<1x8x128xf32> to vector<8x128xf32>
    %cst_24 = arith.constant dense<0.000000e+00> : vector<8x128xf32>
    %44 = tpu.matmul %40, %3, %cst_24 {dimension_numbers = #tpu.dot_dimension_numbers<[1], [0], [0], [1], [0, 0, 1, 1], [], []>} : vector<8x128xf32>, vector<128x128xf32>, vector<8x128xf32> -> vector<8x128xf32>
    %45 = arith.addf %43, %44 : vector<8x128xf32>
    %46 = math.tanh %45 : vector<8x128xf32>
    %c7_i32 = arith.constant 7 : i32
    %47 = arith.index_cast %c7_i32 : i32 to index
    %c0_25 = arith.constant 0 : index
    %c0_26 = arith.constant 0 : index
    %48 = vector.load %arg1[%47, %c0_25, %c0_26] : memref<8x8x128xf32, #tpu.memory_space<vmem>>, vector<1x8x128xf32>
    %49 = vector.shape_cast %48 : vector<1x8x128xf32> to vector<8x128xf32>
    %cst_27 = arith.constant dense<0.000000e+00> : vector<8x128xf32>
    %50 = tpu.matmul %46, %3, %cst_27 {dimension_numbers = #tpu.dot_dimension_numbers<[1], [0], [0], [1], [0, 0, 1, 1], [], []>} : vector<8x128xf32>, vector<128x128xf32>, vector<8x128xf32> -> vector<8x128xf32>
    %51 = arith.addf %49, %50 : vector<8x128xf32>
    %52 = math.tanh %51 : vector<8x128xf32>
    %c8_i32 = arith.constant 8 : i32
    %c0_28 = arith.constant 0 : index
    %c0_29 = arith.constant 0 : index
    %53 = vector.load %arg3[%c0_28, %c0_29] : memref<8x128xf32, #tpu.memory_space<vmem>>, vector<8x128xf32>
    tpu.vector_store %arg3[%c0_28, %c0_29], %52 {strides = array<i32>} : memref<8x128xf32, #tpu.memory_space<vmem>>, vector<8x128xf32>,
    return
  }
  func.func @transform_0(%arg0: i32) -> (i32, i32, i32) {
    %c0_i32 = arith.constant 0 : i32
    %c0_i32_0 = arith.constant 0 : i32
    %c0_i32_1 = arith.constant 0 : i32
    return %arg0, %c0_i32, %c0_i32_0 : i32, i32, i32
  }
  func.func @transform_1(%arg0: i32) -> (i32, i32) {
    %c0_i32 = arith.constant 0 : i32
    %c0_i32_0 = arith.constant 0 : i32
    %c0_i32_1 = arith.constant 0 : i32
    return %c0_i32, %c0_i32_0 : i32, i32
  }
  func.func @transform_2(%arg0: i32) -> (i32, i32) {
    %c0_i32 = arith.constant 0 : i32
    %c0_i32_0 = arith.constant 0 : i32
    %c0_i32_1 = arith.constant 0 : i32
    return %c0_i32, %c0_i32_0 : i32, i32
  }
}

</mosaic_0001>

<llo_original>
// kernel: tpu_custom_call.1
$region0: #{tpu_custom_call.1}
  #allocation0 [shape = 'u32[]', space=smem, size = 0x4, offset = 0x4, fixed_abs, tag = 'smem constant byte address 0x4 - core index']
  #allocation1 [shape = 'u32[144,128]{1,0:T(1,128)}', space=vmem, size = 0x12000, scoped, tag = 'internal scratch']
  %s0 = inlined_call_operand.hbm [shape: f32[8,8,128], index: 0, kind: input, shape index: {}]
  %s1 = inlined_call_operand.hbm [shape: f32[128,128], index: 1, kind: input, shape index: {}]
  %s2 = inlined_call_operand.hbm [shape: f32[8,128], index: 2, kind: output, shape index: {}]
  %s3 = sld [smem:[#allocation0]]
  $region30: #{tpu_custom_call.1} parent=0
    _
  %s5 = ssub.s32 1, %s3
  %s6 = scalar_select 0, %s5, %s3
  $region1: #{tpu_custom_call.1} parent=0
    #allocation2 [shape = 'u8[32768]{0}', space=vmem, size = 0x8000, scoped, tag = 'input window, operand 0, single buffered']
    #allocation3 [shape = 's32[1]{0}', space=sflag, size = 0x4, scoped, tag = 'scoped memory for tpu_custom_call.1']
    #allocation4 [shape = 's32[1]{0}', space=sflag, size = 0x4, scoped, tag = 'scoped memory for tpu_custom_call.1']
    #allocation5 [shape = 'u8[65536]{0}', space=vmem, size = 0x10000, scoped, tag = 'input window, operand 1, single buffered']
    #allocation6 [shape = 's32[1]{0}', space=sflag, size = 0x4, scoped, tag = 'scoped memory for tpu_custom_call.1']
    #allocation7 [shape = 'u8[4096]{0}', space=vmem, size = 0x1000, scoped, tag = 'output window, operand 0, single buffered']
    %7 = vsyncpa [#allocation3], 0
    %8 = vsyncpa [#allocation6], 0
    %9 = vsyncpa [#allocation4], 0
    // Predicated region
    $region2: #{tpu_custom_call.1} parent=1 // pred_check
      _
    $region3: #{tpu_custom_call.1} parent=1 // pred_check_branch
      %11 = sbr.rel (0) target = $region5
    $region4: #{tpu_custom_call.1} parent=1 // pred_region
      %s13 = ssub.s32 1024, 1024
      %14 = vsyncadd [#allocation3], %s13
      %s15 = sshll.u32 [#allocation2], 4
      %s16 = int_to_ptr.vmem [resolvable:$true] %s15
      %21 = dma.hbm_to_vmem [thread:$0]  %s0, 1024, %s16, [#allocation3], 128, 128, 8
    $region5: #{tpu_custom_call.1} parent=1 // pred_fallthru
      _
    // Predicated region
    $region6: #{tpu_custom_call.1} parent=1 // pred_check
      _
    $region7: #{tpu_custom_call.1} parent=1 // pred_check_branch
      %23 = sbr.rel (0) target = $region9
    $region8: #{tpu_custom_call.1} parent=1 // pred_region
      %s25 = ssub.s32 2048, 2048
      %26 = vsyncadd [#allocation6], %s25
      %s27 = sshll.u32 [#allocation5], 4
      %s28 = int_to_ptr.vmem [resolvable:$true] %s27
      %33 = dma.hbm_to_vmem [thread:$0]  %s1, 2048, %s28, [#allocation6], 128, 128, 8
    $region9: #{tpu_custom_call.1} parent=1 // pred_fallthru
      _
    // Predicated region
    $region10: #{tpu_custom_call.1} parent=1 // pred_check
      _
    $region11: #{tpu_custom_call.1} parent=1 // pred_check_branch
      %35 = sbr.rel (0) target = $region13
    $region12: #{tpu_custom_call.1} parent=1 // pred_region
      %36 = dma.done [#allocation3], 1024
    $region13: #{tpu_custom_call.1} parent=1 // pred_fallthru
      _
    // Predicated region
    $region14: #{tpu_custom_call.1} parent=1 // pred_check
      _
    $region15: #{tpu_custom_call.1} parent=1 // pred_check_branch
      %38 = sbr.rel (0) target = $region17
    $region16: #{tpu_custom_call.1} parent=1 // pred_region
      %39 = dma.done [#allocation6], 2048
    $region17: #{tpu_custom_call.1} parent=1 // pred_fallthru
      _
    %p40 = scmp.eq.s32.totalorder 0, 0
    // Predicated region
    $region18: #{tpu_custom_call.1} parent=1 // pred_check
      %p41 = pneg %p40
    $region19: #{tpu_custom_call.1} parent=1 // pred_check_branch
      %43 = sbr.rel (%p41) target = $region21
    $region20: #{tpu_custom_call.1} parent=1 // pred_region
      %44 = vst [vmem:[#allocation7] sm:$0xff] 0.0
    $region21: #{tpu_custom_call.1} parent=1 // pred_fallthru
      _
    %v45 = vld [vmem:[#allocation5] sm:$0xff]
    %v46 = vld [vmem:[#allocation5 + $0x8] sm:$0xff]
    %v47 = vld [vmem:[#allocation5 + $0x10] sm:$0xff]
    %v48 = vld [vmem:[#allocation5 + $0x18] sm:$0xff]
    %v49 = vld [vmem:[#allocation5 + $0x20] sm:$0xff]
    %v50 = vld [vmem:[#allocation5 + $0x28] sm:$0xff]
    %v51 = vld [vmem:[#allocation5 + $0x30] sm:$0xff]
    %v52 = vld [vmem:[#allocation5 + $0x38] sm:$0xff]
    %v53 = vld [vmem:[#allocation5 + $0x40] sm:$0xff]
    %v54 = vld [vmem:[#allocation5 + $0x48] sm:$0xff]
    %v55 = vld [vmem:[#allocation5 + $0x50] sm:$0xff]
    %v56 = vld [vmem:[#allocation5 + $0x58] sm:$0xff]
    %v57 = vld [vmem:[#allocation5 + $0x60] sm:$0xff]
    %v58 = vld [vmem:[#allocation5 + $0x68] sm:$0xff]
    %v59 = vld [vmem:[#allocation5 + $0x70] sm:$0xff]
    %v60 = vld [vmem:[#allocation5 + $0x78] sm:$0xff]
    %v61 = vld [vmem:[#allocation7] sm:$0xff]
    %v62 = vld [vmem:[#allocation2] sm:$0xff]
    %63 = vmatprep.subr.mxu0 0.0
    %64 = vmatpush1.msra.mxu0 %v45
    %65 = vmatprep.subr.mxu0 0.0
    %66 = vmatpush1.msra.mxu0 %v46
    %67 = vmatprep.subr.mxu0 0.0
    %68 = vmatpush1.msra.mxu0 %v47
    %69 = vmatprep.subr.mxu0 0.0
    %70 = vmatpush1.msra.mxu0 %v48
    %71 = vmatprep.subr.mxu0 0.0
    %72 = vmatpush1.msra.mxu0 %v49
    %73 = vmatprep.subr.mxu0 0.0
    %74 = vmatpush1.msra.mxu0 %v50
    %75 = vmatprep.subr.mxu0 0.0
    %76 = vmatpush1.msra.mxu0 %v51
    %77 = vmatprep.subr.mxu0 0.0
    %78 = vmatpush1.msra.mxu0 %v52
    %79 = vmatprep.subr.mxu0 0.0
    %80 = vmatpush1.msra.mxu0 %v53
    %81 = vmatprep.subr.mxu0 0.0
    %82 = vmatpush1.msra.mxu0 %v54
    %83 = vmatprep.subr.mxu0 0.0
    %84 = vmatpush1.msra.mxu0 %v55
    %85 = vmatprep.subr.mxu0 0.0
    %86 = vmatpush1.msra.mxu0 %v56
    %87 = vmatprep.subr.mxu0 0.0
    %88 = vmatpush1.msra.mxu0 %v57
    %89 = vmatprep.subr.mxu0 0.0
    %90 = vmatpush1.msra.mxu0 %v58
    %91 = vmatprep.subr.mxu0 0.0
    %92 = vmatpush1.msra.mxu0 %v59
    %93 = vmatprep.subr.mxu0 0.0
    %94 = vmatpush1.msra.mxu0 %v60
    %95 = vmatprep.subr.mxu0 0.0
    %96 = vmatpush1.msra.mxu0 0.0
    %97 = vmatprep.subr.mxu0 0.0
    %98 = vmatpush1.msra.mxu0 0.0
    %99 = vmatprep.subr.mxu0 0.0
    %100 = vmatpush1.msra.mxu0 0.0
    %101 = vmatprep.subr.mxu0 0.0
    %102 = vmatpush1.msra.mxu0 0.0
    %103 = vmatprep.subr.mxu0 0.0
    %104 = vmatpush1.msra.mxu0 0.0
    %105 = vmatprep.subr.mxu0 0.0
    %106 = vmatpush1.msra.mxu0 0.0
    %107 = vmatprep.subr.mxu0 0.0
    %108 = vmatpush1.msra.mxu0 0.0
    %109 = vmatprep.subr.mxu0 0.0
    %110 = vmatpush1.msra.mxu0 0.0
    %111 = vmatprep.subr.mxu0 0.0
    %112 = vmatpush1.msra.mxu0 0.0
    %113 = vmatprep.subr.mxu0 0.0
    %114 = vmatpush1.msra.mxu0 0.0
    %115 = vmatprep.subr.mxu0 0.0
    %116 = vmatpush1.msra.mxu0 0.0
    %117 = vmatprep.subr.mxu0 0.0
    %118 = vmatpush1.msra.mxu0 0.0
    %119 = vmatprep.subr.mxu0 0.0
    %120 = vmatpush1.msra.mxu0 0.0
    %121 = vmatprep.subr.mxu0 0.0
    %122 = vmatpush1.msra.mxu0 0.0
    %123 = vmatprep.subr.mxu0 0.0
    %124 = vmatpush1.msra.mxu0 0.0
    %125 = vmatprep.subr.mxu0 0.0
    %126 = vmatpush1.msra.mxu0 0.0
    %127 = vmatprep.mubr.f32.mxu0 0.0
    %128 = vmatmul.mubr.f32.gmra.mrb[0].mxu0 %v61
    %v129 = vpop.f32.mrb[0].mxu0
    %v130 = vadd.f32 0.0, %v129
    %v131 = vpop.f32.mrb[0].mxu0
    %132 = vdwg.mxu0
    %v133 = vadd.f32 %v62, %v130
    %v134 = vtanh.pop %v133
    %s135 = scalar_lea.vmem [#allocation2], 8
    %v136 = vld [vmem:[%s135] sm:$0xff]
    %137 = vmatprep.subr.mxu0 0.0
    %138 = vmatpush1.msra.mxu0 %v45
    %139 = vmatprep.subr.mxu0 0.0
    %140 = vmatpush1.msra.mxu0 %v46
    %141 = vmatprep.subr.mxu0 0.0
    %142 = vmatpush1.msra.mxu0 %v47
    %143 = vmatprep.subr.mxu0 0.0
    %144 = vmatpush1.msra.mxu0 %v48
    %145 = vmatprep.subr.mxu0 0.0
    %146 = vmatpush1.msra.mxu0 %v49
    %147 = vmatprep.subr.mxu0 0.0
    %148 = vmatpush1.msra.mxu0 %v50
    %149 = vmatprep.subr.mxu0 0.0
    %150 = vmatpush1.msra.mxu0 %v51
    %151 = vmatprep.subr.mxu0 0.0
    %152 = vmatpush1.msra.mxu0 %v52
    %153 = vmatprep.subr.mxu0 0.0
    %154 = vmatpush1.msra.mxu0 %v53
    %155 = vmatprep.subr.mxu0 0.0
    %156 = vmatpush1.msra.mxu0 %v54
    %157 = vmatprep.subr.mxu0 0.0
    %158 = vmatpush1.msra.mxu0 %v55
    %159 = vmatprep.subr.mxu0 0.0
    %160 = vmatpush1.msra.mxu0 %v56
    %161 = vmatprep.subr.mxu0 0.0
    %162 = vmatpush1.msra.mxu0 %v57
    %163 = vmatprep.subr.mxu0 0.0
    %164 = vmatpush1.msra.mxu0 %v58
    %165 = vmatprep.subr.mxu0 0.0
    %166 = vmatpush1.msra.mxu0 %v59
    %167 = vmatprep.subr.mxu0 0.0
    %168 = vmatpush1.msra.mxu0 %v60
    %169 = vmatprep.subr.mxu0 0.0
    %170 = vmatpush1.msra.mxu0 0.0
    %171 = vmatprep.subr.mxu0 0.0
    %172 = vmatpush1.msra.mxu0 0.0
    %173 = vmatprep.subr.mxu0 0.0
    %174 = vmatpush1.msra.mxu0 0.0
    %175 = vmatprep.subr.mxu0 0.0
    %176 = vmatpush1.msra.mxu0 0.0
    %177 = vmatprep.subr.mxu0 0.0
    %178 = vmatpush1.msra.mxu0 0.0
    %179 = vmatprep.subr.mxu0 0.0
    %180 = vmatpush1.msra.mxu0 0.0
    %181 = vmatprep.subr.mxu0 0.0
    %182 = vmatpush1.msra.mxu0 0.0
    %183 = vmatprep.subr.mxu0 0.0
    %184 = vmatpush1.msra.mxu0 0.0
    %185 = vmatprep.subr.mxu0 0.0
    %186 = vmatpush1.msra.mxu0 0.0
    %187 = vmatprep.subr.mxu0 0.0
    %188 = vmatpush1.msra.mxu0 0.0
    %189 = vmatprep.subr.mxu0 0.0
    %190 = vmatpush1.msra.mxu0 0.0
    %191 = vmatprep.subr.mxu0 0.0
    %192 = vmatpush1.msra.mxu0 0.0
    %193 = vmatprep.subr.mxu0 0.0
    %194 = vmatpush1.msra.mxu0 0.0
    %195 = vmatprep.subr.mxu0 0.0
    %196 = vmatpush1.msra.mxu0 0.0
    %197 = vmatprep.subr.mxu0 0.0
    %198 = vmatpush1.msra.mxu0 0.0
    %199 = vmatprep.subr.mxu0 0.0
    %200 = vmatpush1.msra.mxu0 0.0
    %201 = vmatprep.mubr.f32.mxu0 0.0
    %202 = vmatmul.mubr.f32.gmra.mrb[0].mxu0 %v134
    %v203 = vpop.f32.mrb[0].mxu0
    %v204 = vadd.f32 0.0, %v203
    %v205 = vpop.f32.mrb[0].mxu0
    %206 = vdwg.mxu0
    %v207 = vadd.f32 %v136, %v204
    %v208 = vtanh.pop %v207
    %s209 = scalar_lea.vmem [#allocation2], 16
    %v210 = vld [vmem:[%s209] sm:$0xff]
    %211 = vmatprep.subr.mxu0 0.0
    %212 = vmatpush1.msra.mxu0 %v45
    %213 = vmatprep.subr.mxu0 0.0
    %214 = vmatpush1.msra.mxu0 %v46
    %215 = vmatprep.subr.mxu0 0.0
    %216 = vmatpush1.msra.mxu0 %v47
    %217 = vmatprep.subr.mxu0 0.0
    %218 = vmatpush1.msra.mxu0 %v48
    %219 = vmatprep.subr.mxu0 0.0
    %220 = vmatpush1.msra.mxu0 %v49
    %221 = vmatprep.subr.mxu0 0.0
    %222 = vmatpush1.msra.mxu0 %v50
    %223 = vmatprep.subr.mxu0 0.0
    %224 = vmatpush1.msra.mxu0 %v51
    %225 = vmatprep.subr.mxu0 0.0
    %226 = vmatpush1.msra.mxu0 %v52
    %227 = vmatprep.subr.mxu0 0.0
    %228 = vmatpush1.msra.mxu0 %v53
    %229 = vmatprep.subr.mxu0 0.0
    %230 = vmatpush1.msra.mxu0 %v54
    %231 = vmatprep.subr.mxu0 0.0
    %232 = vmatpush1.msra.mxu0 %v55
    %233 = vmatprep.subr.mxu0 0.0
    %234 = vmatpush1.msra.mxu0 %v56
    %235 = vmatprep.subr.mxu0 0.0
    %236 = vmatpush1.msra.mxu0 %v57
    %237 = vmatprep.subr.mxu0 0.0
    %238 = vmatpush1.msra.mxu0 %v58
    %239 = vmatprep.subr.mxu0 0.0
    %240 = vmatpush1.msra.mxu0 %v59
    %241 = vmatprep.subr.mxu0 0.0
    %242 = vmatpush1.msra.mxu0 %v60
    %243 = vmatprep.subr.mxu0 0.0
    %244 = vmatpush1.msra.mxu0 0.0
    %245 = vmatprep.subr.mxu0 0.0
    %246 = vmatpush1.msra.mxu0 0.0
    %247 = vmatprep.subr.mxu0 0.0
    %248 = vmatpush1.msra.mxu0 0.0
    %249 = vmatprep.subr.mxu0 0.0
    %250 = vmatpush1.msra.mxu0 0.0
    %251 = vmatprep.subr.mxu0 0.0
    %252 = vmatpush1.msra.mxu0 0.0
    %253 = vmatprep.subr.mxu0 0.0
    %254 = vmatpush1.msra.mxu0 0.0
    %255 = vmatprep.subr.mxu0 0.0
    %256 = vmatpush1.msra.mxu0 0.0
    %257 = vmatprep.subr.mxu0 0.0
    %258 = vmatpush1.msra.mxu0 0.0
    %259 = vmatprep.subr.mxu0 0.0
    %260 = vmatpush1.msra.mxu0 0.0
    %261 = vmatprep.subr.mxu0 0.0
    %262 = vmatpush1.msra.mxu0 0.0
    %263 = vmatprep.subr.mxu0 0.0
    %264 = vmatpush1.msra.mxu0 0.0
    %265 = vmatprep.subr.mxu0 0.0
    %266 = vmatpush1.msra.mxu0 0.0
    %267 = vmatprep.subr.mxu0 0.0
    %268 = vmatpush1.msra.mxu0 0.0
    %269 = vmatprep.subr.mxu0 0.0
    %270 = vmatpush1.msra.mxu0 0.0
    %271 = vmatprep.subr.mxu0 0.0
    %272 = vmatpush1.msra.mxu0 0.0
    %273 = vmatprep.subr.mxu0 0.0
    %274 = vmatpush1.msra.mxu0 0.0
    %275 = vmatprep.mubr.f32.mxu0 0.0
    %276 = vmatmul.mubr.f32.gmra.mrb[0].mxu0 %v208
    %v277 = vpop.f32.mrb[0].mxu0
    %v278 = vadd.f32 0.0, %v277
    %v279 = vpop.f32.mrb[0].mxu0
    %280 = vdwg.mxu0
    %v281 = vadd.f32 %v210, %v278
    %v282 = vtanh.pop %v281
    %s283 = scalar_lea.vmem [#allocation2], 24
    %v284 = vld [vmem:[%s283] sm:$0xff]
    %285 = vmatprep.subr.mxu0 0.0
    %286 = vmatpush1.msra.mxu0 %v45
    %287 = vmatprep.subr.mxu0 0.0
    %288 = vmatpush1.msra.mxu0 %v46
    %289 = vmatprep.subr.mxu0 0.0
    %290 = vmatpush1.msra.mxu0 %v47
    %291 = vmatprep.subr.mxu0 0.0
    %292 = vmatpush1.msra.mxu0 %v48
    %293 = vmatprep.subr.mxu0 0.0
    %294 = vmatpush1.msra.mxu0 %v49
    %295 = vmatprep.subr.mxu0 0.0
    %296 = vmatpush1.msra.mxu0 %v50
    %297 = vmatprep.subr.mxu0 0.0
    %298 = vmatpush1.msra.mxu0 %v51
    %299 = vmatprep.subr.mxu0 0.0
    %300 = vmatpush1.msra.mxu0 %v52
    %301 = vmatprep.subr.mxu0 0.0
    %302 = vmatpush1.msra.mxu0 %v53
    %303 = vmatprep.subr.mxu0 0.0
    %304 = vmatpush1.msra.mxu0 %v54
    %305 = vmatprep.subr.mxu0 0.0
    %306 = vmatpush1.msra.mxu0 %v55
    %307 = vmatprep.subr.mxu0 0.0
    %308 = vmatpush1.msra.mxu0 %v56
    %309 = vmatprep.subr.mxu0 0.0
    %310 = vmatpush1.msra.mxu0 %v57
    %311 = vmatprep.subr.mxu0 0.0
    %312 = vmatpush1.msra.mxu0 %v58
    %313 = vmatprep.subr.mxu0 0.0
    %314 = vmatpush1.msra.mxu0 %v59
    %315 = vmatprep.subr.mxu0 0.0
    %316 = vmatpush1.msra.mxu0 %v60
    %317 = vmatprep.subr.mxu0 0.0
    %318 = vmatpush1.msra.mxu0 0.0
    %319 = vmatprep.subr.mxu0 0.0
    %320 = vmatpush1.msra.mxu0 0.0
    %321 = vmatprep.subr.mxu0 0.0
    %322 = vmatpush1.msra.mxu0 0.0
    %323 = vmatprep.subr.mxu0 0.0
    %324 = vmatpush1.msra.mxu0 0.0
    %325 = vmatprep.subr.mxu0 0.0
    %326 = vmatpush1.msra.mxu0 0.0
    %327 = vmatprep.subr.mxu0 0.0
    %328 = vmatpush1.msra.mxu0 0.0
    %329 = vmatprep.subr.mxu0 0.0
    %330 = vmatpush1.msra.mxu0 0.0
    %331 = vmatprep.subr.mxu0 0.0
    %332 = vmatpush1.msra.mxu0 0.0
    %333 = vmatprep.subr.mxu0 0.0
    %334 = vmatpush1.msra.mxu0 0.0
    %335 = vmatprep.subr.mxu0 0.0
    %336 = vmatpush1.msra.mxu0 0.0
    %337 = vmatprep.subr.mxu0 0.0
    %338 = vmatpush1.msra.mxu0 0.0
    %339 = vmatprep.subr.mxu0 0.0
    %340 = vmatpush1.msra.mxu0 0.0
    %341 = vmatprep.subr.mxu0 0.0
    %342 = vmatpush1.msra.mxu0 0.0
    %343 = vmatprep.subr.mxu0 0.0
    %344 = vmatpush1.msra.mxu0 0.0
    %345 = vmatprep.subr.mxu0 0.0
    %346 = vmatpush1.msra.mxu0 0.0
    %347 = vmatprep.subr.mxu0 0.0
    %348 = vmatpush1.msra.mxu0 0.0
    %349 = vmatprep.mubr.f32.mxu0 0.0
    %350 = vmatmul.mubr.f32.gmra.mrb[0].mxu0 %v282
    %v351 = vpop.f32.mrb[0].mxu0
    %v352 = vadd.f32 0.0, %v351
    %v353 = vpop.f32.mrb[0].mxu0
    %354 = vdwg.mxu0
    %v355 = vadd.f32 %v284, %v352
    %v356 = vtanh.pop %v355
    %s357 = scalar_lea.vmem [#allocation2], 32
    %v358 = vld [vmem:[%s357] sm:$0xff]
    %359 = vmatprep.subr.mxu0 0.0
    %360 = vmatpush1.msra.mxu0 %v45
    %361 = vmatprep.subr.mxu0 0.0
    %362 = vmatpush1.msra.mxu0 %v46
    %363 = vmatprep.subr.mxu0 0.0
    %364 = vmatpush1.msra.mxu0 %v47
    %365 = vmatprep.subr.mxu0 0.0
    %366 = vmatpush1.msra.mxu0 %v48
    %367 = vmatprep.subr.mxu0 0.0
    %368 = vmatpush1.msra.mxu0 %v49
    %369 = vmatprep.subr.mxu0 0.0
    %370 = vmatpush1.msra.mxu0 %v50
    %371 = vmatprep.subr.mxu0 0.0
    %372 = vmatpush1.msra.mxu0 %v51
    %373 = vmatprep.subr.mxu0 0.0
    %374 = vmatpush1.msra.mxu0 %v52
    %375 = vmatprep.subr.mxu0 0.0
    %376 = vmatpush1.msra.mxu0 %v53
    %377 = vmatprep.subr.mxu0 0.0
    %378 = vmatpush1.msra.mxu0 %v54
    %379 = vmatprep.subr.mxu0 0.0
    %380 = vmatpush1.msra.mxu0 %v55
    %381 = vmatprep.subr.mxu0 0.0
    %382 = vmatpush1.msra.mxu0 %v56
    %383 = vmatprep.subr.mxu0 0.0
    %384 = vmatpush1.msra.mxu0 %v57
    %385 = vmatprep.subr.mxu0 0.0
    %386 = vmatpush1.msra.mxu0 %v58
    %387 = vmatprep.subr.mxu0 0.0
    %388 = vmatpush1.msra.mxu0 %v59
    %389 = vmatprep.subr.mxu0 0.0
    %390 = vmatpush1.msra.mxu0 %v60
    %391 = vmatprep.subr.mxu0 0.0
    %392 = vmatpush1.msra.mxu0 0.0
    %393 = vmatprep.subr.mxu0 0.0
    %394 = vmatpush1.msra.mxu0 0.0
    %395 = vmatprep.subr.mxu0 0.0
    %396 = vmatpush1.msra.mxu0 0.0
    %397 = vmatprep.subr.mxu0 0.0
    %398 = vmatpush1.msra.mxu0 0.0
    %399 = vmatprep.subr.mxu0 0.0
    %400 = vmatpush1.msra.mxu0 0.0
    %401 = vmatprep.subr.mxu0 0.0
    %402 = vmatpush1.msra.mxu0 0.0
    %403 = vmatprep.subr.mxu0 0.0
    %404 = vmatpush1.msra.mxu0 0.0
    %405 = vmatprep.subr.mxu0 0.0
    %406 = vmatpush1.msra.mxu0 0.0
    %407 = vmatprep.subr.mxu0 0.0
    %408 = vmatpush1.msra.mxu0 0.0
    %409 = vmatprep.subr.mxu0 0.0
    %410 = vmatpush1.msra.mxu0 0.0
    %411 = vmatprep.subr.mxu0 0.0
    %412 = vmatpush1.msra.mxu0 0.0
    %413 = vmatprep.subr.mxu0 0.0
    %414 = vmatpush1.msra.mxu0 0.0
    %415 = vmatprep.subr.mxu0 0.0
    %416 = vmatpush1.msra.mxu0 0.0
    %417 = vmatprep.subr.mxu0 0.0
    %418 = vmatpush1.msra.mxu0 0.0
    %419 = vmatprep.subr.mxu0 0.0
    %420 = vmatpush1.msra.mxu0 0.0
    %421 = vmatprep.subr.mxu0 0.0
    %422 = vmatpush1.msra.mxu0 0.0
    %423 = vmatprep.mubr.f32.mxu0 0.0
    %424 = vmatmul.mubr.f32.gmra.mrb[0].mxu0 %v356
    %v425 = vpop.f32.mrb[0].mxu0
    %v426 = vadd.f32 0.0, %v425
    %v427 = vpop.f32.mrb[0].mxu0
    %428 = vdwg.mxu0
    %v429 = vadd.f32 %v358, %v426
    %v430 = vtanh.pop %v429
    %s431 = scalar_lea.vmem [#allocation2], 40
    %v432 = vld [vmem:[%s431] sm:$0xff]
    %433 = vmatprep.subr.mxu0 0.0
    %434 = vmatpush1.msra.mxu0 %v45
    %435 = vmatprep.subr.mxu0 0.0
    %436 = vmatpush1.msra.mxu0 %v46
    %437 = vmatprep.subr.mxu0 0.0
    %438 = vmatpush1.msra.mxu0 %v47
    %439 = vmatprep.subr.mxu0 0.0
    %440 = vmatpush1.msra.mxu0 %v48
    %441 = vmatprep.subr.mxu0 0.0
    %442 = vmatpush1.msra.mxu0 %v49
    %443 = vmatprep.subr.mxu0 0.0
    %444 = vmatpush1.msra.mxu0 %v50
    %445 = vmatprep.subr.mxu0 0.0
    %446 = vmatpush1.msra.mxu0 %v51
    %447 = vmatprep.subr.mxu0 0.0
    %448 = vmatpush1.msra.mxu0 %v52
    %449 = vmatprep.subr.mxu0 0.0
    %450 = vmatpush1.msra.mxu0 %v53
    %451 = vmatprep.subr.mxu0 0.0
    %452 = vmatpush1.msra.mxu0 %v54
    %453 = vmatprep.subr.mxu0 0.0
    %454 = vmatpush1.msra.mxu0 %v55
    %455 = vmatprep.subr.mxu0 0.0
    %456 = vmatpush1.msra.mxu0 %v56
    %457 = vmatprep.subr.mxu0 0.0
    %458 = vmatpush1.msra.mxu0 %v57
    %459 = vmatprep.subr.mxu0 0.0
    %460 = vmatpush1.msra.mxu0 %v58
    %461 = vmatprep.subr.mxu0 0.0
    %462 = vmatpush1.msra.mxu0 %v59
    %463 = vmatprep.subr.mxu0 0.0
    %464 = vmatpush1.msra.mxu0 %v60
    %465 = vmatprep.subr.mxu0 0.0
    %466 = vmatpush1.msra.mxu0 0.0
    %467 = vmatprep.subr.mxu0 0.0
    %468 = vmatpush1.msra.mxu0 0.0
    %469 = vmatprep.subr.mxu0 0.0
    %470 = vmatpush1.msra.mxu0 0.0
    %471 = vmatprep.subr.mxu0 0.0
    %472 = vmatpush1.msra.mxu0 0.0
    %473 = vmatprep.subr.mxu0 0.0
    %474 = vmatpush1.msra.mxu0 0.0
    %475 = vmatprep.subr.mxu0 0.0
    %476 = vmatpush1.msra.mxu0 0.0
    %477 = vmatprep.subr.mxu0 0.0
    %478 = vmatpush1.msra.mxu0 0.0
    %479 = vmatprep.subr.mxu0 0.0
    %480 = vmatpush1.msra.mxu0 0.0
    %481 = vmatprep.subr.mxu0 0.0
    %482 = vmatpush1.msra.mxu0 0.0
    %483 = vmatprep.subr.mxu0 0.0
    %484 = vmatpush1.msra.mxu0 0.0
    %485 = vmatprep.subr.mxu0 0.0
    %486 = vmatpush1.msra.mxu0 0.0
    %487 = vmatprep.subr.mxu0 0.0
    %488 = vmatpush1.msra.mxu0 0.0
    %489 = vmatprep.subr.mxu0 0.0
    %490 = vmatpush1.msra.mxu0 0.0
    %491 = vmatprep.subr.mxu0 0.0
    %492 = vmatpush1.msra.mxu0 0.0
    %493 = vmatprep.subr.mxu0 0.0
    %494 = vmatpush1.msra.mxu0 0.0
    %495 = vmatprep.subr.mxu0 0.0
    %496 = vmatpush1.msra.mxu0 0.0
    %497 = vmatprep.mubr.f32.mxu0 0.0
    %498 = vmatmul.mubr.f32.gmra.mrb[0].mxu0 %v430
    %v499 = vpop.f32.mrb[0].mxu0
    %v500 = vadd.f32 0.0, %v499
    %v501 = vpop.f32.mrb[0].mxu0
    %502 = vdwg.mxu0
    %v503 = vadd.f32 %v432, %v500
    %v504 = vtanh.pop %v503
    %s505 = scalar_lea.vmem [#allocation2], 48
    %v506 = vld [vmem:[%s505] sm:$0xff]
    %507 = vmatprep.subr.mxu0 0.0
    %508 = vmatpush1.msra.mxu0 %v45
    %509 = vmatprep.subr.mxu0 0.0
    %510 = vmatpush1.msra.mxu0 %v46
    %511 = vmatprep.subr.mxu0 0.0
    %512 = vmatpush1.msra.mxu0 %v47
    %513 = vmatprep.subr.mxu0 0.0
    %514 = vmatpush1.msra.mxu0 %v48
    %515 = vmatprep.subr.mxu0 0.0
    %516 = vmatpush1.msra.mxu0 %v49
    %517 = vmatprep.subr.mxu0 0.0
    %518 = vmatpush1.msra.mxu0 %v50
    %519 = vmatprep.subr.mxu0 0.0
    %520 = vmatpush1.msra.mxu0 %v51
    %521 = vmatprep.subr.mxu0 0.0
    %522 = vmatpush1.msra.mxu0 %v52
    %523 = vmatprep.subr.mxu0 0.0
    %524 = vmatpush1.msra.mxu0 %v53
    %525 = vmatprep.subr.mxu0 0.0
    %526 = vmatpush1.msra.mxu0 %v54
    %527 = vmatprep.subr.mxu0 0.0
    %528 = vmatpush1.msra.mxu0 %v55
    %529 = vmatprep.subr.mxu0 0.0
    %530 = vmatpush1.msra.mxu0 %v56
    %531 = vmatprep.subr.mxu0 0.0
    %532 = vmatpush1.msra.mxu0 %v57
    %533 = vmatprep.subr.mxu0 0.0
    %534 = vmatpush1.msra.mxu0 %v58
    %535 = vmatprep.subr.mxu0 0.0
    %536 = vmatpush1.msra.mxu0 %v59
    %537 = vmatprep.subr.mxu0 0.0
    %538 = vmatpush1.msra.mxu0 %v60
    %539 = vmatprep.subr.mxu0 0.0
    %540 = vmatpush1.msra.mxu0 0.0
    %541 = vmatprep.subr.mxu0 0.0
    %542 = vmatpush1.msra.mxu0 0.0
    %543 = vmatprep.subr.mxu0 0.0
    %544 = vmatpush1.msra.mxu0 0.0
    %545 = vmatprep.subr.mxu0 0.0
    %546 = vmatpush1.msra.mxu0 0.0
    %547 = vmatprep.subr.mxu0 0.0
    %548 = vmatpush1.msra.mxu0 0.0
    %549 = vmatprep.subr.mxu0 0.0
    %550 = vmatpush1.msra.mxu0 0.0
    %551 = vmatprep.subr.mxu0 0.0
    %552 = vmatpush1.msra.mxu0 0.0
    %553 = vmatprep.subr.mxu0 0.0
    %554 = vmatpush1.msra.mxu0 0.0
    %555 = vmatprep.subr.mxu0 0.0
    %556 = vmatpush1.msra.mxu0 0.0
    %557 = vmatprep.subr.mxu0 0.0
    %558 = vmatpush1.msra.mxu0 0.0
    %559 = vmatprep.subr.mxu0 0.0
    %560 = vmatpush1.msra.mxu0 0.0
    %561 = vmatprep.subr.mxu0 0.0
    %562 = vmatpush1.msra.mxu0 0.0
    %563 = vmatprep.subr.mxu0 0.0
    %564 = vmatpush1.msra.mxu0 0.0
    %565 = vmatprep.subr.mxu0 0.0
    %566 = vmatpush1.msra.mxu0 0.0
    %567 = vmatprep.subr.mxu0 0.0
    %568 = vmatpush1.msra.mxu0 0.0
    %569 = vmatprep.subr.mxu0 0.0
    %570 = vmatpush1.msra.mxu0 0.0
    %571 = vmatprep.mubr.f32.mxu0 0.0
    %572 = vmatmul.mubr.f32.gmra.mrb[0].mxu0 %v504
    %v573 = vpop.f32.mrb[0].mxu0
    %v574 = vadd.f32 0.0, %v573
    %v575 = vpop.f32.mrb[0].mxu0
    %576 = vdwg.mxu0
    %v577 = vadd.f32 %v506, %v574
    %v578 = vtanh.pop %v577
    %s579 = scalar_lea.vmem [#allocation2], 56
    %v580 = vld [vmem:[%s579] sm:$0xff]
    %581 = vmatprep.subr.mxu0 0.0
    %582 = vmatpush1.msra.mxu0 %v45
    %583 = vmatprep.subr.mxu0 0.0
    %584 = vmatpush1.msra.mxu0 %v46
    %585 = vmatprep.subr.mxu0 0.0
    %586 = vmatpush1.msra.mxu0 %v47
    %587 = vmatprep.subr.mxu0 0.0
    %588 = vmatpush1.msra.mxu0 %v48
    %589 = vmatprep.subr.mxu0 0.0
    %590 = vmatpush1.msra.mxu0 %v49
    %591 = vmatprep.subr.mxu0 0.0
    %592 = vmatpush1.msra.mxu0 %v50
    %593 = vmatprep.subr.mxu0 0.0
    %594 = vmatpush1.msra.mxu0 %v51
    %595 = vmatprep.subr.mxu0 0.0
    %596 = vmatpush1.msra.mxu0 %v52
    %597 = vmatprep.subr.mxu0 0.0
    %598 = vmatpush1.msra.mxu0 %v53
    %599 = vmatprep.subr.mxu0 0.0
    %600 = vmatpush1.msra.mxu0 %v54
    %601 = vmatprep.subr.mxu0 0.0
    %602 = vmatpush1.msra.mxu0 %v55
    %603 = vmatprep.subr.mxu0 0.0
    %604 = vmatpush1.msra.mxu0 %v56
    %605 = vmatprep.subr.mxu0 0.0
    %606 = vmatpush1.msra.mxu0 %v57
    %607 = vmatprep.subr.mxu0 0.0
    %608 = vmatpush1.msra.mxu0 %v58
    %609 = vmatprep.subr.mxu0 0.0
    %610 = vmatpush1.msra.mxu0 %v59
    %611 = vmatprep.subr.mxu0 0.0
    %612 = vmatpush1.msra.mxu0 %v60
    %613 = vmatprep.subr.mxu0 0.0
    %614 = vmatpush1.msra.mxu0 0.0
    %615 = vmatprep.subr.mxu0 0.0
    %616 = vmatpush1.msra.mxu0 0.0
    %617 = vmatprep.subr.mxu0 0.0
    %618 = vmatpush1.msra.mxu0 0.0
    %619 = vmatprep.subr.mxu0 0.0
    %620 = vmatpush1.msra.mxu0 0.0
    %621 = vmatprep.subr.mxu0 0.0
    %622 = vmatpush1.msra.mxu0 0.0
    %623 = vmatprep.subr.mxu0 0.0
    %624 = vmatpush1.msra.mxu0 0.0
    %625 = vmatprep.subr.mxu0 0.0
    %626 = vmatpush1.msra.mxu0 0.0
    %627 = vmatprep.subr.mxu0 0.0
    %628 = vmatpush1.msra.mxu0 0.0
    %629 = vmatprep.subr.mxu0 0.0
    %630 = vmatpush1.msra.mxu0 0.0
    %631 = vmatprep.subr.mxu0 0.0
    %632 = vmatpush1.msra.mxu0 0.0
    %633 = vmatprep.subr.mxu0 0.0
    %634 = vmatpush1.msra.mxu0 0.0
    %635 = vmatprep.subr.mxu0 0.0
    %636 = vmatpush1.msra.mxu0 0.0
    %637 = vmatprep.subr.mxu0 0.0
    %638 = vmatpush1.msra.mxu0 0.0
    %639 = vmatprep.subr.mxu0 0.0
    %640 = vmatpush1.msra.mxu0 0.0
    %641 = vmatprep.subr.mxu0 0.0
    %642 = vmatpush1.msra.mxu0 0.0
    %643 = vmatprep.subr.mxu0 0.0
    %644 = vmatpush1.msra.mxu0 0.0
    %645 = vmatprep.mubr.f32.mxu0 0.0
    %646 = vmatmul.mubr.f32.gmra.mrb[0].mxu0 %v578
    %v647 = vpop.f32.mrb[0].mxu0
    %v648 = vadd.f32 0.0, %v647
    %v649 = vpop.f32.mrb[0].mxu0
    %650 = vdwg.mxu0
    %v651 = vadd.f32 %v580, %v648
    %v652 = vtanh.pop %v651
    %653 = vst [vmem:[#allocation7] sm:$0xff] %v652
    // Predicated region
    $region22: #{tpu_custom_call.1} parent=1 // pred_check
      _
    $region23: #{tpu_custom_call.1} parent=1 // pred_check_branch
      %655 = sbr.rel (0) target = $region25
    $region24: #{tpu_custom_call.1} parent=1 // pred_region
      %s657 = ssub.s32 128, 128
      %658 = vsyncadd [#allocation4], %s657
      %s660 = sshll.u32 [#allocation7], 4
      %s661 = int_to_ptr.vmem [resolvable:$true] %s660
      %663 = dma.vmem_to_hbm [thread:$0]  %s661, 128, %s2, [#allocation4]
    $region25: #{tpu_custom_call.1} parent=1 // pred_fallthru
      _
    // Predicated region
    $region26: #{tpu_custom_call.1} parent=1 // pred_check
      _
    $region27: #{tpu_custom_call.1} parent=1 // pred_check_branch
      %665 = sbr.rel (0) target = $region29
    $region28: #{tpu_custom_call.1} parent=1 // pred_region
      %666 = dma.done [#allocation4], 128
    $region29: #{tpu_custom_call.1} parent=1 // pred_fallthru
      _
    %667 = vsyncpa [#allocation3], 1
    %668 = vsyncpa [#allocation6], 1
    %669 = vsyncpa [#allocation4], 1

</llo_original>
